<compile_context>
chip_gen: v6e
topology: v6e:2x2x1
jax: 0.10.0
libtpu: 0.0.40
codegen_flags: <defaults>
</compile_context>

<pallas_src>
import functools

import jax
import jax.numpy as jnp
from jax.experimental import pallas as pl
from jax.experimental.pallas import tpu as pltpu

_LANE = 128


def _round_up(a, b):
    return pl.cdiv(a, b) * b


def _sublane_for(dtype):
    # 4-byte -> 8 rows/vreg, 2-byte -> 16, 1-byte -> 32 (sublane packing).
    return max(8, 32 // jnp.dtype(dtype).itemsize)


def _target_tile_bytes():
    # ~2 MiB tiles are on the HBM-roofline plateau on v5e/v6e; v7x's higher
    # per-TC HBM bandwidth amortizes the ~0.35us per-step cost better with
    # ~4 MiB tiles (4 x 4 MiB live buffers << 32 MiB scoped-VMEM default).
    try:
        kind = jax.devices()[0].device_kind.lower()
    except Exception:
        kind = ""
    if "v7" in kind or "tpu7" in kind:
        return 4 * 1024 * 1024
    return 2 * 1024 * 1024


def _swish_kernel(x_ref, o_ref, *, approx):
    # HBM-bound elementwise op: keep the body minimal. Compute in f32 (free in
    # VALU/EUP slots; avoids bf16 gaps on v5e and matches f32 reference
    # accuracy); sigmoid = recip(1 + exp(-x)) so the divide uses the EUP slot.
    x = x_ref[...].astype(jnp.float32)
    sig = pl.reciprocal(1.0 + jnp.exp(-x), approx=approx)
    o_ref[...] = (x * sig).astype(o_ref.dtype)


def swish_pallas(x, *, max_lanes=2048, tile_bytes=None):
    """Swish / SiLU: x * sigmoid(x). Elementwise, any shape, preserves dtype."""
    orig_shape = x.shape
    orig_dtype = x.dtype
    n = x.size
    if n == 0:
        return x

    itemsize = jnp.dtype(orig_dtype).itemsize
    sublane = _sublane_for(orig_dtype)
    if tile_bytes is None:
        tile_bytes = _target_tile_bytes()

    # --- choose a lane-dense 2D slab (rows, cols) --------------------------
    # Prefer the widest cols that divides n exactly -> flat->2D reshape is
    # metadata-only (no pad, no slice).
    max_cols = max(_LANE, (max_lanes // _LANE) * _LANE)
    cols = None
    c = max_cols
    while c >= _LANE:
        if n % c == 0:
            cols = c
            break
        c //= 2
    ragged = cols is None
    if ragged:
        # Truly ragged size: wide cols (shrunk for tiny inputs), pad rows only
        # up to the dtype sublane multiple -- never to a multiple of the tile.
        cols = max_cols
        while cols > _LANE and n < cols * sublane:
            cols //= 2

    rows = pl.cdiv(n, cols)
    rows_pad = _round_up(rows, sublane) if ragged else rows
    n_pad = rows_pad * cols

    # --- tile rows ----------------------------------------------------------
    tr_cap = max(sublane, (tile_bytes // (cols * itemsize)) // sublane * sublane)
    tr = rows_pad if rows_pad <= tr_cap else tr_cap
    # v7x megacore: guarantee >= 2 grid steps when there's enough work so both
    # TensorCores are used; no-op on single-TC v5e/v6e.
    if rows_pad >= 2 * sublane and pl.cdiv(rows_pad, tr) < 2:
        tr = _round_up(pl.cdiv(rows_pad, 2), sublane)
    grid = (pl.cdiv(rows_pad, tr),)  # last block may be partial -> Pallas masks it

    x_flat = x.reshape(-1)
    if n_pad != n:
        # Ragged fallback only; sigmoid(0)*0 == 0, and the pad region is
        # sliced off below so it never leaks.
        x_flat = jnp.pad(x_flat, (0, n_pad - n))
    x2d = x_flat.reshape(rows_pad, cols)

    kernel = functools.partial(_swish_kernel, approx=(itemsize < 4))

    out2d = pl.pallas_call(
        kernel,
        out_shape=jax.ShapeDtypeStruct((rows_pad, cols), orig_dtype),
        grid_spec=pltpu.PrefetchScalarGridSpec(
            num_scalar_prefetch=0,
            grid=grid,
            in_specs=[pl.BlockSpec((tr, cols), lambda i: (i, 0))],
            out_specs=pl.BlockSpec((tr, cols), lambda i: (i, 0)),
        ),
        compiler_params=pltpu.CompilerParams(
            dimension_semantics=("parallel",),  # megacore sharding on v7x
        ),
    )(x2d)

    if n_pad != n:
        return out2d.reshape(n_pad)[:n].reshape(orig_shape)
    return out2d.reshape(orig_shape)


def swish_ref(x):
    x32 = x.astype(jnp.float32)
    return (x32 * jax.nn.sigmoid(x32)).astype(x.dtype)


if __name__ == "__main__":
    key = jax.random.PRNGKey(0)

    # Primary case: NCHW activation tensor (exact lane-dense fit: no pad/slice).
    x = jax.random.normal(key, (2, 4, 16, 16), dtype=jnp.float32) * 4.0
    out = jax.block_until_ready(swish_pallas(x))
    assert out.shape == x.shape and out.dtype == x.dtype
    assert jnp.allclose(out, swish_ref(x), atol=1e-5, rtol=1e-4), "f32 mismatch"

    # Multi-step grid (megacore split path), exact division.
    x2 = jax.random.normal(jax.random.PRNGKey(1), (64, 2048), dtype=jnp.float32) * 4.0
    out2 = jax.block_until_ready(swish_pallas(x2))
    assert jnp.allclose(out2, swish_ref(x2), atol=1e-5, rtol=1e-4), "grid mismatch"

    # Partial (masked) last block: rows not a multiple of the tile rows.
    x3 = jax.random.normal(jax.random.PRNGKey(2), (100, 256), dtype=jnp.float32) * 2.0
    out3 = jax.block_until_ready(swish_pallas(x3))
    assert jnp.allclose(out3, swish_ref(x3), atol=1e-5, rtol=1e-4), "partial-block mismatch"

    # Ragged bf16 case (pad fallback + f32 in-kernel compute + approx recip).
    x4 = jax.random.normal(jax.random.PRNGKey(3), (3, 5, 7), dtype=jnp.bfloat16) * 2.0
    out4 = jax.block_until_ready(swish_pallas(x4))
    assert out4.shape == x4.shape and out4.dtype == jnp.bfloat16
    assert jnp.allclose(out4.astype(jnp.float32), swish_ref(x4).astype(jnp.float32),
                        atol=2e-2, rtol=5e-2), "bf16 mismatch"

    print("KERNEL_OK")
</pallas_src>

<mosaic_0001>
module attributes {stable_mosaic.version = 11 : i64} {
  func.func @_swish_kernel(%arg0: i32, %arg1: memref<1x2048xf32, #tpu.memory_space<vmem>>, %arg2: memref<1x2048xf32, #tpu.memory_space<vmem>>) attributes {dimension_semantics = [#tpu.dimension_semantics<parallel>], iteration_bounds = array<i64: 1>, scalar_prefetch = 0 : i64, scratch_operands = 0 : i64, tpu.core_type = #tpu.core_type<tc>, window_params = [{transform_indices = @transform_0, window_bounds = array<i64: 1, 2048>}, {transform_indices = @transform_1, window_bounds = array<i64: 1, 2048>}]} {
    %c0 = arith.constant 0 : index
    %c0_0 = arith.constant 0 : index
    %0 = vector.load %arg1[%c0, %c0_0] : memref<1x2048xf32, #tpu.memory_space<vmem>>, vector<1x2048xf32>
    %cst = arith.constant 0.000000e+00 : f32
    %1 = vector.broadcast %cst : f32 to vector<1x2048xf32>
    %2 = arith.subf %1, %0 : vector<1x2048xf32>
    %3 = math.exp %2 : vector<1x2048xf32>
    %cst_1 = arith.constant 1.000000e+00 : f32
    %4 = vector.broadcast %cst_1 : f32 to vector<1x2048xf32>
    %5 = arith.addf %4, %3 : vector<1x2048xf32>
    %6 = tpu.reciprocal %5 : vector<1x2048xf32> -> vector<1x2048xf32>
    %7 = arith.mulf %0, %6 : vector<1x2048xf32>
    %c0_2 = arith.constant 0 : index
    %c0_3 = arith.constant 0 : index
    %8 = vector.load %arg2[%c0_2, %c0_3] : memref<1x2048xf32, #tpu.memory_space<vmem>>, vector<1x2048xf32>
    tpu.vector_store %arg2[%c0_2, %c0_3], %7 {strides = array<i32>} : memref<1x2048xf32, #tpu.memory_space<vmem>>, vector<1x2048xf32>,
    return
  }
  func.func @transform_0(%arg0: i32) -> (i32, i32) {
    %c0_i32 = arith.constant 0 : i32
    %c0_i32_0 = arith.constant 0 : i32
    return %arg0, %c0_i32 : i32, i32
  }
  func.func @transform_1(%arg0: i32) -> (i32, i32) {
    %c0_i32 = arith.constant 0 : i32
    %c0_i32_0 = arith.constant 0 : i32
    return %arg0, %c0_i32 : i32, i32
  }
}

</mosaic_0001>

<llo_original>
// kernel: tpu_custom_call.1
$region0: #{tpu_custom_call.1}
  #allocation0 [shape = 'u32[]', space=smem, size = 0x4, offset = 0x4, fixed_abs, tag = 'smem constant byte address 0x4 - core index']
  #allocation1 [shape = 'u32[144,128]{1,0:T(1,128)}', space=vmem, size = 0x12000, scoped, tag = 'internal scratch']
  %s0 = inlined_call_operand.hbm [shape: f32[1,2048], index: 0, kind: input, shape index: {}]
  %s1 = inlined_call_operand.hbm [shape: f32[1,2048], index: 1, kind: output, shape index: {}]
  %s2 = sld [smem:[#allocation0]]
  $region18: #{tpu_custom_call.1} parent=0
    _
  %s4 = ssub.s32 1, %s2
  %s5 = scalar_select 0, %s4, %s2
  $region1: #{tpu_custom_call.1} parent=0
    #allocation2 [shape = 'u8[8192]{0}', space=vmem, size = 0x2000, scoped, tag = 'input window, operand 0, single buffered']
    #allocation3 [shape = 's32[1]{0}', space=sflag, size = 0x4, scoped, tag = 'scoped memory for tpu_custom_call.1']
    #allocation4 [shape = 's32[1]{0}', space=sflag, size = 0x4, scoped, tag = 'scoped memory for tpu_custom_call.1']
    #allocation5 [shape = 'u8[8192]{0}', space=vmem, size = 0x2000, scoped, tag = 'output window, operand 0, single buffered']
    %6 = vsyncpa [#allocation3], 0
    %7 = vsyncpa [#allocation4], 0
    // Predicated region
    $region2: #{tpu_custom_call.1} parent=1 // pred_check
      _
    $region3: #{tpu_custom_call.1} parent=1 // pred_check_branch
      %9 = sbr.rel (0) target = $region5
    $region4: #{tpu_custom_call.1} parent=1 // pred_region
      %s11 = ssub.s32 256, 256
      %12 = vsyncadd [#allocation3], %s11
      %s14 = sshll.u32 [#allocation2], 4
      %s15 = int_to_ptr.vmem [resolvable:$true] %s14
      %17 = dma.hbm_to_vmem [thread:$0]  %s0, 256, %s15, [#allocation3]
    $region5: #{tpu_custom_call.1} parent=1 // pred_fallthru
      _
    // Predicated region
    $region6: #{tpu_custom_call.1} parent=1 // pred_check
      _
    $region7: #{tpu_custom_call.1} parent=1 // pred_check_branch
      %19 = sbr.rel (0) target = $region9
    $region8: #{tpu_custom_call.1} parent=1 // pred_region
      %20 = dma.done [#allocation3], 256
    $region9: #{tpu_custom_call.1} parent=1 // pred_fallthru
      _
    %v21 = vld [vmem:[#allocation2] sm:$0xff]
    %v22 = vld [vmem:[#allocation2 + $0x8] sm:$0xff]
    %v23 = vsub.f32 0.0, %v21
    %v24 = vsub.f32 0.0, %v22
    %v25 = vmul.f32 %v23, 1.442695
    %v26 = vpow.pop %v25
    %v27 = vmul.f32 %v24, 1.442695
    %v28 = vpow.pop %v27
    %v29 = vadd.f32 %v26, 1.0
    %v30 = vadd.f32 %v28, 1.0
    %v31 = vrcp.pop %v29
    %v32 = vrcp.pop %v30
    %v33 = vmul.f32 %v21, %v31
    %v34 = vmul.f32 %v22, %v32
    %35 = vst [vmem:[#allocation5] sm:$0xff] %v33
    %36 = vst [vmem:[#allocation5 + $0x8] sm:$0xff] %v34
    // Predicated region
    $region10: #{tpu_custom_call.1} parent=1 // pred_check
      _
    $region11: #{tpu_custom_call.1} parent=1 // pred_check_branch
      %38 = sbr.rel (0) target = $region13
    $region12: #{tpu_custom_call.1} parent=1 // pred_region
      %s40 = ssub.s32 256, 256
      %41 = vsyncadd [#allocation4], %s40
      %s43 = sshll.u32 [#allocation5], 4
      %s44 = int_to_ptr.vmem [resolvable:$true] %s43
      %46 = dma.vmem_to_hbm [thread:$0]  %s44, 256, %s1, [#allocation4]
    $region13: #{tpu_custom_call.1} parent=1 // pred_fallthru
      _
    // Predicated region
    $region14: #{tpu_custom_call.1} parent=1 // pred_check
      _
    $region15: #{tpu_custom_call.1} parent=1 // pred_check_branch
      %48 = sbr.rel (0) target = $region17
    $region16: #{tpu_custom_call.1} parent=1 // pred_region
      %49 = dma.done [#allocation4], 256
    $region17: #{tpu_custom_call.1} parent=1 // pred_fallthru
      _
    %50 = vsyncpa [#allocation3], 1
    %51 = vsyncpa [#allocation4], 1

</llo_original>
